<compile_context>
chip_gen: v5e
topology: v5e:2x2
jax: 0.10.0
libtpu: 0.0.40
codegen_flags: <defaults>
</compile_context>

<pallas_src>
import functools

import jax
import jax.numpy as jnp
from jax.experimental import pallas as pl
from jax.experimental.pallas import tpu as pltpu

_EPS = 1e-5
_LANE = 128


def _ln_nchw_kernel(x_ref, w_ref, o_ref):
    """x_ref/o_ref: (1, C, T) with spatial on lanes; w_ref: (C, 1).

    Per lane (pixel): mu = mean_c x, var = E_c[x^2] - mu^2 (biased), then
    out = (x - mu) * rsqrt(var + eps) * weight[c].
    """
    x = x_ref[0].astype(jnp.float32)                        # (C, T)
    inv_c = 1.0 / x.shape[0]
    # One traversal for both sums (mean and second moment).
    s1 = jnp.sum(x, axis=0, keepdims=True)                  # (1, T)
    s2 = jnp.sum(x * x, axis=0, keepdims=True)               # (1, T)
    mu = s1 * inv_c
    var = s2 * inv_c - mu * mu                               # unbiased=False
    inv = jax.lax.rsqrt(var + _EPS)                          # per-pixel rsqrt (EUP)
    w = w_ref[...].astype(jnp.float32)                       # (C, 1)
    o_ref[0] = ((x - mu) * inv * w).astype(o_ref.dtype)


def _round_up(x, m):
    return ((x + m - 1) // m) * m


def _default_vmem_budget_bytes():
    """~1/4 of physical VMEM: ~24 MiB on v5e/v6e (128 MiB), 16 MiB on v7x (64 MiB)."""
    try:
        cap = int(pltpu.get_tpu_info().vmem_capacity_bytes)
    except Exception:
        cap = 64 << 20                                       # conservative fallback
    return min(cap // 4, 24 << 20)


def _choose_spatial_tile(hw, c, itemsize, batch, target_block_bytes,
                         vmem_budget_bytes):
    """Pick the lane tile T for the flattened spatial axis and the grid size."""
    if hw <= _LANE:
        return hw, 1                                         # full-extent block
    # VMEM per spatial lane: in + out blocks (double-buffered by the pipeline)
    # at the input dtype, plus ~2 f32 slabs of in-kernel working set.
    vmem_per_lane = 4 * c * itemsize + 8 * c
    t_vmem = vmem_budget_bytes // vmem_per_lane
    # Lanes needed to hit the per-block HBM byte target (input block bytes).
    t_target = target_block_bytes // (c * itemsize)
    max_t = max(_LANE, (min(t_vmem, t_target) // _LANE) * _LANE)

    n_w = pl.cdiv(hw, max_t)
    # Keep >= 2 spatial blocks when the batch axis alone would leave a second
    # TensorCore idle (v7x has 2 TCs; one extra ~0.35 us step elsewhere).
    if batch == 1 and n_w < 2 and hw >= 2 * _LANE:
        n_w = 2
    if n_w == 1:
        return hw, 1                                         # full-extent block
    # Balanced blocks, no divisor search: ragged final block is masked.
    t = _round_up(pl.cdiv(hw, n_w), _LANE)                   # t <= max_t
    return t, pl.cdiv(hw, t)


@functools.partial(jax.jit,
                   static_argnames=("target_block_bytes", "vmem_budget_bytes"))
def shufflemixer_layernorm(x, weight, *, target_block_bytes=2 << 20,
                           vmem_budget_bytes=None):
    """Fused to_3d -> BiasFree_LayerNorm -> to_4d on an NCHW tensor.

    x: (B, C, H, W); weight: (C,).  Returns (B, C, H, W) with x's dtype.
    """
    B, C, H, W = x.shape
    hw = H * W
    x3 = x.reshape(B, C, hw)                 # contiguous reshape, no data movement
    w2 = weight.reshape(C, 1)
    itemsize = int(jnp.dtype(x.dtype).itemsize)

    if vmem_budget_bytes is None:
        vmem_budget_bytes = _default_vmem_budget_bytes()

    t, n_w = _choose_spatial_tile(hw, C, itemsize, B, int(target_block_bytes),
                                  int(vmem_budget_bytes))

    # Explicit scoped-VMEM limit matching the accounting above (+ headroom),
    # kept well under v7x's 64 MiB physical VMEM.
    vmem_est = (4 * C * itemsize + 8 * C) * t + (1 << 20)
    vmem_limit = int(min(max(vmem_est + (4 << 20), 32 << 20), 48 << 20))

    out = pl.pallas_call(
        _ln_nchw_kernel,
        out_shape=jax.ShapeDtypeStruct((B, C, hw), x.dtype),
        grid_spec=pltpu.PrefetchScalarGridSpec(
            num_scalar_prefetch=0,
            grid=(B, n_w),
            in_specs=[
                pl.BlockSpec((1, C, t), lambda b, j: (b, 0, j)),
                pl.BlockSpec((C, 1), lambda b, j: (0, 0)),
            ],
            out_specs=pl.BlockSpec((1, C, t), lambda b, j: (b, 0, j)),
        ),
        compiler_params=pltpu.CompilerParams(
            dimension_semantics=("parallel", "parallel"),
            vmem_limit_bytes=vmem_limit,
        ),
    )(x3, w2)
    return out.reshape(B, C, H, W)


@functools.partial(jax.jit, static_argnames=("target_block_bytes",))
def biasfree_layernorm(x_tokens_last, weight, *, target_block_bytes=2 << 20):
    """Raw BiasFree_LayerNorm interface: x (B, N, C), normalize over last axis.

    Interface-only convenience: the two swapaxes are full HBM round trips in
    XLA (~3x the bytes of the LN itself).  Inside ShuffleMixer use
    `shufflemixer_layernorm`, which runs directly on the NCHW tensor with no
    transposes.
    """
    B, N, C = x_tokens_last.shape
    x_cf = jnp.swapaxes(x_tokens_last, 1, 2).reshape(B, C, N, 1)
    y = shufflemixer_layernorm(x_cf, weight,
                               target_block_bytes=target_block_bytes)
    return jnp.swapaxes(y.reshape(B, C, N), 1, 2)


# ------------------------- references (pure JAX) -------------------------

def _ref_layernorm_nchw(x, weight):
    xf = x.astype(jnp.float32)
    mu = jnp.mean(xf, axis=1, keepdims=True)
    var = jnp.mean((xf - mu) ** 2, axis=1, keepdims=True)
    y = (xf - mu) / jnp.sqrt(var + _EPS) * weight.astype(jnp.float32)[None, :, None, None]
    return y.astype(x.dtype)


def _ref_biasfree_ln(x, weight):
    xf = x.astype(jnp.float32)
    mu = jnp.mean(xf, axis=-1, keepdims=True)
    var = jnp.mean((xf - mu) ** 2, axis=-1, keepdims=True)
    y = (xf - mu) / jnp.sqrt(var + _EPS) * weight.astype(jnp.float32)
    return y.astype(x.dtype)


if __name__ == "__main__":
    key = jax.random.PRNGKey(0)
    kx, kw, kx2, kx3, kx4, kx5 = jax.random.split(key, 6)

    C = 32                                    # ShuffleMixer tiny-model dim
    weight = 1.0 + 0.1 * jax.random.normal(kw, (C,), dtype=jnp.float32)

    # 1) Single-block-per-batch path: (2, 32, 16, 16) f32.
    x = jax.random.normal(kx, (2, C, 16, 16), dtype=jnp.float32)
    out = jax.block_until_ready(shufflemixer_layernorm(x, weight))
    assert out.shape == x.shape and out.dtype == x.dtype
    assert jnp.allclose(out, _ref_layernorm_nchw(x, weight), atol=1e-4, rtol=1e-4)

    # 2) Multi-tile path: H*W = 1024, forced 256-lane tiles -> 4 spatial blocks.
    x2 = jax.random.normal(kx2, (1, C, 32, 32), dtype=jnp.float32)
    out2 = jax.block_until_ready(
        shufflemixer_layernorm(x2, weight, target_block_bytes=C * 4 * 256))
    assert jnp.allclose(out2, _ref_layernorm_nchw(x2, weight), atol=1e-4, rtol=1e-4)

    # 3) Ragged spatial size: H*W = 360, 128-lane tiles -> masked final block.
    x3 = jax.random.normal(kx3, (1, C, 18, 20), dtype=jnp.float32)
    out3 = jax.block_until_ready(
        shufflemixer_layernorm(x3, weight, target_block_bytes=C * 4 * 128))
    assert jnp.allclose(out3, _ref_layernorm_nchw(x3, weight), atol=1e-4, rtol=1e-4)

    # 4) B == 1 default path: split into >= 2 spatial blocks (keeps 2 TCs busy).
    x4 = jax.random.normal(kx4, (1, C, 16, 32), dtype=jnp.float32)
    out4 = jax.block_until_ready(shufflemixer_layernorm(x4, weight))
    assert jnp.allclose(out4, _ref_layernorm_nchw(x4, weight), atol=1e-4, rtol=1e-4)

    # 5) bf16 end-to-end (halves HBM traffic; kernel accumulates stats in f32).
    x5 = jax.random.normal(kx5, (2, C, 16, 16), dtype=jnp.bfloat16)
    out5 = jax.block_until_ready(shufflemixer_layernorm(x5, weight))
    assert out5.dtype == jnp.bfloat16
    assert jnp.allclose(out5.astype(jnp.float32),
                        _ref_layernorm_nchw(x5, weight).astype(jnp.float32),
                        atol=5e-2, rtol=5e-2)

    # 6) Raw BiasFree_LayerNorm (channel-last tokens) interface.
    x6 = jax.random.normal(kx, (2, 64, C), dtype=jnp.float32)
    out6 = jax.block_until_ready(biasfree_layernorm(x6, weight))
    assert jnp.allclose(out6, _ref_biasfree_ln(x6, weight), atol=1e-4, rtol=1e-4)

    print("KERNEL_OK")
</pallas_src>

<mosaic_0001>
module attributes {stable_mosaic.version = 11 : i64} {
  func.func @_ln_nchw_kernel(%arg0: i32, %arg1: i32, %arg2: memref<1x32x256xf32, #tpu.memory_space<vmem>>, %arg3: memref<32x1xf32, #tpu.memory_space<vmem>>, %arg4: memref<1x32x256xf32, #tpu.memory_space<vmem>>) attributes {dimension_semantics = [#tpu.dimension_semantics<parallel>, #tpu.dimension_semantics<parallel>], iteration_bounds = array<i64: 2, 1>, scalar_prefetch = 0 : i64, scratch_operands = 0 : i64, tpu.core_type = #tpu.core_type<tc>, window_params = [{transform_indices = @transform_0, window_bounds = array<i64: 1, 32, 256>}, {pipeline_mode = #tpu.pipeline_mode<synchronous>, transform_indices = @transform_1, window_bounds = array<i64: 32, 1>}, {transform_indices = @transform_2, window_bounds = array<i64: 1, 32, 256>}]} {
    %c0 = arith.constant 0 : index
    %c0_0 = arith.constant 0 : index
    %c0_1 = arith.constant 0 : index
    %0 = vector.load %arg2[%c0, %c0_0, %c0_1] : memref<1x32x256xf32, #tpu.memory_space<vmem>>, vector<1x32x256xf32>
    %1 = vector.shape_cast %0 : vector<1x32x256xf32> to vector<32x256xf32>
    %cst = arith.constant dense<0.000000e+00> : vector<256xf32>
    %2 = vector.multi_reduction <add>, %1, %cst [0] : vector<32x256xf32> to vector<256xf32>
    %3 = vector.shape_cast %2 : vector<256xf32> to vector<1x256xf32>
    %4 = arith.mulf %1, %1 : vector<32x256xf32>
    %cst_2 = arith.constant dense<0.000000e+00> : vector<256xf32>
    %5 = vector.multi_reduction <add>, %4, %cst_2 [0] : vector<32x256xf32> to vector<256xf32>
    %6 = vector.shape_cast %5 : vector<256xf32> to vector<1x256xf32>
    %cst_3 = arith.constant 3.125000e-02 : f32
    %7 = vector.broadcast %cst_3 : f32 to vector<1x256xf32>
    %8 = arith.mulf %3, %7 : vector<1x256xf32>
    %cst_4 = arith.constant 3.125000e-02 : f32
    %9 = vector.broadcast %cst_4 : f32 to vector<1x256xf32>
    %10 = arith.mulf %6, %9 : vector<1x256xf32>
    %11 = arith.mulf %8, %8 : vector<1x256xf32>
    %12 = arith.subf %10, %11 : vector<1x256xf32>
    %cst_5 = arith.constant 9.99999974E-6 : f32
    %13 = vector.broadcast %cst_5 : f32 to vector<1x256xf32>
    %14 = arith.addf %12, %13 : vector<1x256xf32>
    %15 = math.rsqrt %14 : vector<1x256xf32>
    %c0_6 = arith.constant 0 : index
    %c0_7 = arith.constant 0 : index
    %16 = vector.load %arg3[%c0_6, %c0_7] : memref<32x1xf32, #tpu.memory_space<vmem>>, vector<32x1xf32>
    %17 = vector.broadcast %8 : vector<1x256xf32> to vector<32x256xf32>
    %18 = arith.subf %1, %17 : vector<32x256xf32>
    %19 = vector.broadcast %15 : vector<1x256xf32> to vector<32x256xf32>
    %20 = arith.mulf %18, %19 : vector<32x256xf32>
    %21 = vector.broadcast %16 : vector<32x1xf32> to vector<32x256xf32>
    %22 = arith.mulf %20, %21 : vector<32x256xf32>
    %c0_8 = arith.constant 0 : index
    %c0_9 = arith.constant 0 : index
    %c0_10 = arith.constant 0 : index
    %23 = vector.load %arg4[%c0_8, %c0_9, %c0_10] : memref<1x32x256xf32, #tpu.memory_space<vmem>>, vector<1x32x256xf32>
    %24 = vector.shape_cast %23 : vector<1x32x256xf32> to vector<32x256xf32>
    %25 = vector.shape_cast %22 : vector<32x256xf32> to vector<1x32x256xf32>
    tpu.vector_store %arg4[%c0_8, %c0_9, %c0_10], %25 {strides = array<i32>} : memref<1x32x256xf32, #tpu.memory_space<vmem>>, vector<1x32x256xf32>,
    return
  }
  func.func @transform_0(%arg0: i32, %arg1: i32) -> (i32, i32, i32) {
    %c0_i32 = arith.constant 0 : i32
    %c0_i32_0 = arith.constant 0 : i32
    return %arg0, %c0_i32, %arg1 : i32, i32, i32
  }
  func.func @transform_1(%arg0: i32, %arg1: i32) -> (i32, i32) {
    %c0_i32 = arith.constant 0 : i32
    %c0_i32_0 = arith.constant 0 : i32
    %c0_i32_1 = arith.constant 0 : i32
    return %c0_i32, %c0_i32_0 : i32, i32
  }
  func.func @transform_2(%arg0: i32, %arg1: i32) -> (i32, i32, i32) {
    %c0_i32 = arith.constant 0 : i32
    %c0_i32_0 = arith.constant 0 : i32
    return %arg0, %c0_i32, %arg1 : i32, i32, i32
  }
}

</mosaic_0001>

<llo_original>
// kernel: shufflemixer_layernorm.1
$region0: #{shufflemixer_layernorm.1}
  #allocation0 [shape = 'u32[]', space=smem, size = 0x4, offset = 0x4, fixed_abs, tag = 'smem constant byte address 0x4 - core index']
  #allocation1 [shape = 'u32[72,128]{1,0:T(1,128)}', space=vmem, size = 0x9000, scoped, tag = 'internal scratch']
  %s0 = inlined_call_operand.vmem [shape: f32[2,32,256], index: 0, kind: input, shape index: {}]
  %s1 = inlined_call_operand.vmem [shape: f32[32,1], index: 1, kind: input, shape index: {}]
  %s2 = inlined_call_operand.vmem [shape: f32[2,32,256], index: 2, kind: output, shape index: {}]
  %s3 = sld [smem:[#allocation0]]
  $region41: #{shufflemixer_layernorm.1} parent=0
    _
  %s5 = ssub.s32 1, %s3
  %s6 = scalar_select 0, %s5, %s3
  loop: start=0, step=1, limit=4
  $region2: #{shufflemixer_layernorm.1} parent=0 // loop_pre_header
    _
  $region3: #{shufflemixer_layernorm.1} parent=0 // loop_header
    %s8 = sphi 0, %s12
    %p9 = scmp.ge.s32.totalorder %s8, 4
    %s15 = sphi 0, %s27
    %s16 = sphi 0, %s23
    %s17 = sphi 0, %s15
    %s18 = sphi 0, %s16
    %s19 = sphi 0, %s17
    %s20 = sphi 0, %s18
    %s32 = sphi 0, %s34
    %s35 = sphi 0, %s32
    %s36 = sphi 0, %s35
    %s52 = sphi 0, %s36
    %s56 = sphi 0, %s56
    %s58 = sphi 0, %s56
    %s59 = sphi 0, %s58
    %s73 = sphi 0, %s59
    %s81 = sphi 0, %s83
    %s84 = sphi 0, %s81
    %s85 = sphi 0, %s84
    %s101 = sphi 0, %s85
  $region4: #{shufflemixer_layernorm.1} parent=0 // loop_header_branch
    %11 = sbr.rel (%p9) target = $region8
  $region5: #{shufflemixer_layernorm.1} parent=0 // loop_body
    %s13 = ssub.s32 %s8, 1
    %s14 = ssub.s32 %s8, 2
    %s21 = sadd.s32 1, %s16
    %p22 = scmp.ge.s32.totalorder %s21, 1
    %s23 = scalar_select %p22, 0, %s21
    %s24 = sadd.s32 1, %s15
    %s25 = scalar_select %p22, %s24, %s15
    %p26 = scmp.ge.s32.totalorder %s25, 2
    %s27 = scalar_select %p26, 0, %s25
    %s28 = ssub.s32 %s15, %s27
    %s29 = ssub.s32 %s16, %s23
    %s30 = sor.u32 %s28, %s29
    %p31 = scmp.eq.s32.totalorder %s30, 0
    %s33 = sadd.s32 %s32, 1
    %s34 = scalar_select %p31, %s32, %s33
    %p37 = pneg %p31
    %p38 = scmp.eq.s32.totalorder %s8, 1
    %p39 = por %p37, %p38
    %p40 = scmp.ne.s32.totalorder %s32, %s35
    %p41 = scmp.eq.s32.totalorder %s8, 0
    %p42 = por %p40, %p41
    %p43 = scmp.ne.s32.totalorder %s32, %s35
    %p44 = scmp.eq.s32.totalorder %s13, 1
    %p45 = por %p43, %p44
    %p46 = scmp.ne.s32.totalorder %s35, %s36
    %p47 = scmp.eq.s32.totalorder %s13, 0
    %p48 = por %p46, %p47
    %p49 = scmp.ne.s32.totalorder %s35, %s36
    %p50 = scmp.eq.s32.totalorder %s14, 1
    %p51 = por %p49, %p50
    %p53 = scmp.ne.s32.totalorder %s36, %s52
    %p54 = scmp.eq.s32.totalorder %s14, 0
    %p55 = por %p53, %p54
    %s57 = sadd.s32 %s56, 1
    %p60 = scmp.eq.s32.totalorder %s8, 1
    %p61 = scmp.ne.s32.totalorder %s56, %s58
    %p62 = scmp.eq.s32.totalorder %s8, 0
    %p63 = por %p61, %p62
    %p64 = scmp.ne.s32.totalorder %s56, %s58
    %p65 = scmp.eq.s32.totalorder %s13, 1
    %p66 = por %p64, %p65
    %p67 = scmp.ne.s32.totalorder %s58, %s59
    %p68 = scmp.eq.s32.totalorder %s13, 0
    %p69 = por %p67, %p68
    %p70 = scmp.ne.s32.totalorder %s58, %s59
    %p71 = scmp.eq.s32.totalorder %s14, 1
    %p72 = por %p70, %p71
    %p74 = scmp.ne.s32.totalorder %s59, %s73
    %p75 = scmp.eq.s32.totalorder %s14, 0
    %p76 = por %p74, %p75
    %s77 = ssub.s32 %s15, %s27
    %s78 = ssub.s32 %s16, %s23
    %s79 = sor.u32 %s77, %s78
    %p80 = scmp.eq.s32.totalorder %s79, 0
    %s82 = sadd.s32 %s81, 1
    %s83 = scalar_select %p80, %s81, %s82
    %p86 = pneg %p80
    %p87 = scmp.eq.s32.totalorder %s8, 1
    %p88 = por %p86, %p87
    %p89 = scmp.ne.s32.totalorder %s81, %s84
    %p90 = scmp.eq.s32.totalorder %s8, 0
    %p91 = por %p89, %p90
    %p92 = scmp.ne.s32.totalorder %s81, %s84
    %p93 = scmp.eq.s32.totalorder %s13, 1
    %p94 = por %p92, %p93
    %p95 = scmp.ne.s32.totalorder %s84, %s85
    %p96 = scmp.eq.s32.totalorder %s13, 0
    %p97 = por %p95, %p96
    %p98 = scmp.ne.s32.totalorder %s84, %s85
    %p99 = scmp.eq.s32.totalorder %s14, 1
    %p100 = por %p98, %p99
    %p102 = scmp.ne.s32.totalorder %s85, %s101
    %p103 = scmp.eq.s32.totalorder %s14, 0
    %p104 = por %p102, %p103
    %p105 = scmp.le.s32.totalorder 1, %s8
    %p106 = scmp.lt.s32.totalorder %s8, 3
    %p107 = pnand %p105, %p106
    %p108 = pneg %p107
    // Predicated region
    $region9: #{shufflemixer_layernorm.1} parent=5 // pred_check
      _
    $region10: #{shufflemixer_layernorm.1} parent=5 // pred_check_branch
      %110 = sbr.rel (%p107) target = $region12
    $region11: #{shufflemixer_layernorm.1} parent=5 // pred_region
      %s111 = ssub.s32 %s8, 1
      // Predicated region
      $region13: #{shufflemixer_layernorm.1} parent=11 // pred_check
        %p112 = pneg %p69
      $region14: #{shufflemixer_layernorm.1} parent=11 // pred_check_branch
        %114 = sbr.rel (%p112) target = $region16
      $region15: #{shufflemixer_layernorm.1} parent=11 // pred_region
        _
      $region16: #{shufflemixer_layernorm.1} parent=11 // pred_fallthru
        _
    $region12: #{shufflemixer_layernorm.1} parent=5 // pred_fallthru
      _
    %p115 = scmp.lt.s32.totalorder %s8, 2
    // Predicated region
    $region17: #{shufflemixer_layernorm.1} parent=5 // pred_check
      %p116 = pneg %p115
    $region18: #{shufflemixer_layernorm.1} parent=5 // pred_check_branch
      %118 = sbr.rel (%p116) target = $region20
    $region19: #{shufflemixer_layernorm.1} parent=5 // pred_region
      // Predicated region
      $region21: #{shufflemixer_layernorm.1} parent=19 // pred_check
        %p119 = pneg %p42
      $region22: #{shufflemixer_layernorm.1} parent=19 // pred_check_branch
        %121 = sbr.rel (%p119) target = $region24
      $region23: #{shufflemixer_layernorm.1} parent=19 // pred_region
        %s122 = smul.u32 2, %s16
        %p123 = scmp.lt.s32.totalorder %s15, 1
        %s124 = scalar_select %p123, %s15, 1
        %p125 = scmp.lt.s32.totalorder %s122, 1
        %s126 = scalar_select %p125, %s122, 1
        %s127 = smul.addr %s124, 8
        %s128 = sadd.s32 %s126, %s127
        %s129 = smul.addr %s128, 8
        %s130 = scalar_lea.vmem %s0, %s129
        %s131 = smul.u32 2, %s16
      $region24: #{shufflemixer_layernorm.1} parent=19 // pred_fallthru
        _
    $region20: #{shufflemixer_layernorm.1} parent=5 // pred_fallthru
      _
    %p132 = scmp.le.s32.totalorder 1, %s8
    %p133 = scmp.lt.s32.totalorder %s8, 3
    %p134 = pnand %p132, %p133
    %p135 = pneg %p134
    // Predicated region
    $region25: #{shufflemixer_layernorm.1} parent=5 // pred_check
      _
    $region26: #{shufflemixer_layernorm.1} parent=5 // pred_check_branch
      %137 = sbr.rel (%p134) target = $region28
    $region27: #{shufflemixer_layernorm.1} parent=5 // pred_region
      %s138 = ssub.s32 %s8, 1
      %s139 = smul.u32 2, %s18
      %p140 = scmp.lt.s32.totalorder %s17, 1
      %s141 = scalar_select %p140, %s17, 1
      %p142 = scmp.lt.s32.totalorder %s139, 1
      %s143 = scalar_select %p142, %s139, 1
      %s144 = smul.addr %s141, 8
      %s145 = sadd.s32 %s143, %s144
      %s146 = smul.addr %s145, 8
      %s147 = scalar_lea.vmem %s0, %s146
      %p148 = pneg %p48
      %p149 = pneg %p45
      %p150 = pneg %p69
      %p151 = pneg %p66
      %p152 = pneg %p97
      %p153 = pneg %p94
      %s154 = smul.u32 2, %s18
      %p155 = scmp.lt.s32.totalorder %s17, 1
      %s156 = scalar_select %p155, %s17, 1
      %p157 = scmp.lt.s32.totalorder %s154, 1
      %s158 = scalar_select %p157, %s154, 1
      %s159 = smul.addr %s156, 8
      %s160 = sadd.s32 %s158, %s159
      %s161 = smul.addr %s160, 8
      %s162 = scalar_lea.vmem %s2, %s161
      %s163 = smul.u32 2, %s18
      %p164 = scmp.lt.s32.totalorder %s17, 1
      %s165 = scalar_select %p164, %s17, 1
      %p166 = scmp.lt.s32.totalorder %s163, 1
      %s167 = scalar_select %p166, %s163, 1
      %s168 = smul.addr %s165, 8
      %s169 = sadd.s32 %s167, %s168
      %s170 = smul.addr %s169, 8
      %s171 = scalar_lea.vmem %s0, %s170
      %s172 = smul.u32 2, %s18
      %s173 = smul.u32 2, %s18
      %p174 = scmp.lt.s32.totalorder %s17, 1
      %s175 = scalar_select %p174, %s17, 1
      %p176 = scmp.lt.s32.totalorder %s173, 1
      %s177 = scalar_select %p176, %s173, 1
      %s178 = smul.addr %s175, 8
      %s179 = sadd.s32 %s177, %s178
      %s180 = smul.addr %s179, 8
      %s181 = scalar_lea.vmem %s2, %s180
      %s182 = smul.u32 2, %s18
      %v183 = vld [vmem:[%s171] sm:$0xff]
      %v184 = vld [vmem:[%s171 + $0x8] sm:$0xff]
      %v185 = vld [vmem:[%s171 + $0x10] sm:$0xff]
      %v186 = vld [vmem:[%s171 + $0x18] sm:$0xff]
      %v187 = vld [vmem:[%s171 + $0x20] sm:$0xff]
      %v188 = vld [vmem:[%s171 + $0x28] sm:$0xff]
      %v189 = vld [vmem:[%s171 + $0x30] sm:$0xff]
      %v190 = vld [vmem:[%s171 + $0x38] sm:$0xff]
      %v191 = vadd.f32 %v183, %v185
      %v192 = vadd.f32 %v191, %v187
      %v193 = vadd.f32 %v192, %v189
      %v194 = vrot.slane %v193, 4
      %v195 = vadd.f32 %v193, %v194
      %v196 = vrot.slane %v195, 2
      %v197 = vadd.f32 %v195, %v196
      %v198 = vrot.slane %v197, 1
      %v199 = vadd.f32 %v197, %v198
      %v200 = vadd.f32 %v184, %v186
      %v201 = vadd.f32 %v200, %v188
      %v202 = vadd.f32 %v201, %v190
      %v203 = vrot.slane %v202, 4
      %v204 = vadd.f32 %v202, %v203
      %v205 = vrot.slane %v204, 2
      %v206 = vadd.f32 %v204, %v205
      %v207 = vrot.slane %v206, 1
      %v208 = vadd.f32 %v206, %v207
      %v209 = vmul.f32 %v183, %v183
      %v210 = vmul.f32 %v184, %v184
      %v211 = vmul.f32 %v185, %v185
      %v212 = vmul.f32 %v186, %v186
      %v213 = vmul.f32 %v187, %v187
      %v214 = vmul.f32 %v188, %v188
      %v215 = vmul.f32 %v189, %v189
      %v216 = vmul.f32 %v190, %v190
      %v217 = vadd.f32 %v209, %v211
      %v218 = vadd.f32 %v217, %v213
      %v219 = vadd.f32 %v218, %v215
      %v220 = vrot.slane %v219, 4
      %v221 = vadd.f32 %v219, %v220
      %v222 = vrot.slane %v221, 2
      %v223 = vadd.f32 %v221, %v222
      %v224 = vrot.slane %v223, 1
      %v225 = vadd.f32 %v223, %v224
      %v226 = vadd.f32 %v210, %v212
      %v227 = vadd.f32 %v226, %v214
      %v228 = vadd.f32 %v227, %v216
      %v229 = vrot.slane %v228, 4
      %v230 = vadd.f32 %v228, %v229
      %v231 = vrot.slane %v230, 2
      %v232 = vadd.f32 %v230, %v231
      %v233 = vrot.slane %v232, 1
      %v234 = vadd.f32 %v232, %v233
      %v235 = vmul.f32 %v199, 0.03125
      %v236 = vmul.f32 %v208, 0.03125
      %v237 = vmul.f32 %v225, 0.03125
      %v238 = vmul.f32 %v234, 0.03125
      %v239 = vmul.f32 %v235, %v235
      %v240 = vmul.f32 %v236, %v236
      %v241 = vsub.f32 %v237, %v239
      %v242 = vsub.f32 %v238, %v240
      %v243 = vadd.f32 %v241, 1e-05
      %v244 = vadd.f32 %v242, 1e-05
      %v245 = vrsqrt.pop %v243
      %v246 = vmul.f32 %v245, %v243
      %v247 = vmul.f32 %v246, %v245
      %v248 = vmul.f32 0.5, %v247
      %v249 = vsub.f32 1.5, %v248
      %v250 = vmul.f32 %v245, %v249
      %vm251 = vweird.f32 %v243
      %vm252 = vweird.f32 %v245
      %vm253 = vmor %vm251, %vm252
      %v254 = vsel %vm253, %v245, %v250
      %v255 = vrsqrt.pop %v244
      %v256 = vmul.f32 %v255, %v244
      %v257 = vmul.f32 %v256, %v255
      %v258 = vmul.f32 0.5, %v257
      %v259 = vsub.f32 1.5, %v258
      %v260 = vmul.f32 %v255, %v259
      %vm261 = vweird.f32 %v244
      %vm262 = vweird.f32 %v255
      %vm263 = vmor %vm261, %vm262
      %v264 = vsel %vm263, %v255, %v260
      %v265 = vld [vmem:[%s1] sm:$0xff]
      %v266 = vld [vmem:[%s1 + $0x8] sm:$0xff]
      %v267 = vld [vmem:[%s1 + $0x10] sm:$0xff]
      %v268 = vld [vmem:[%s1 + $0x18] sm:$0xff]
      %v269 = vsub.f32 %v183, %v235
      %v270 = vsub.f32 %v184, %v236
      %v271 = vsub.f32 %v185, %v235
      %v272 = vsub.f32 %v186, %v236
      %v273 = vsub.f32 %v187, %v235
      %v274 = vsub.f32 %v188, %v236
      %v275 = vsub.f32 %v189, %v235
      %v276 = vsub.f32 %v190, %v236
      %v277 = vmul.f32 %v269, %v254
      %v278 = vmul.f32 %v270, %v264
      %v279 = vmul.f32 %v271, %v254
      %v280 = vmul.f32 %v272, %v264
      %v281 = vmul.f32 %v273, %v254
      %v282 = vmul.f32 %v274, %v264
      %v283 = vmul.f32 %v275, %v254
      %v284 = vmul.f32 %v276, %v264
      %286 = vset.pattern.permute.xlu0 0
      %287 = vperm.xlu0 %286, %v265
      %v288 = vpop.permute.xlu0 %287
      %291 = vset.pattern.permute.xlu0 0
      %292 = vperm.xlu0 %291, %v266
      %v293 = vpop.permute.xlu0 %292
      %296 = vset.pattern.permute.xlu0 0
      %297 = vperm.xlu0 %296, %v267
      %v298 = vpop.permute.xlu0 %297
      %301 = vset.pattern.permute.xlu0 0
      %302 = vperm.xlu0 %301, %v268
      %v303 = vpop.permute.xlu0 %302
      %v305 = vmul.f32 %v277, %v288
      %v306 = vmul.f32 %v278, %v288
      %v307 = vmul.f32 %v279, %v293
      %v308 = vmul.f32 %v280, %v293
      %v309 = vmul.f32 %v281, %v298
      %v310 = vmul.f32 %v282, %v298
      %v311 = vmul.f32 %v283, %v303
      %v312 = vmul.f32 %v284, %v303
      %313 = vst [vmem:[%s181] sm:$0xff] %v305
      %314 = vst [vmem:[%s181 + $0x8] sm:$0xff] %v306
      %315 = vst [vmem:[%s181 + $0x10] sm:$0xff] %v307
      %316 = vst [vmem:[%s181 + $0x18] sm:$0xff] %v308
      %317 = vst [vmem:[%s181 + $0x20] sm:$0xff] %v309
      %318 = vst [vmem:[%s181 + $0x28] sm:$0xff] %v310
      %319 = vst [vmem:[%s181 + $0x30] sm:$0xff] %v311
      %320 = vst [vmem:[%s181 + $0x38] sm:$0xff] %v312
      %s321 = smul.u32 2, %s18
      %p322 = scmp.lt.s32.totalorder %s17, 1
      %s323 = scalar_select %p322, %s17, 1
      %p324 = scmp.lt.s32.totalorder %s321, 1
      %s325 = scalar_select %p324, %s321, 1
      %s326 = smul.addr %s323, 8
      %s327 = sadd.s32 %s325, %s326
      %s328 = smul.addr %s327, 8
      %s329 = scalar_lea.vmem %s2, %s328
      // Predicated region
      $region29: #{shufflemixer_layernorm.1} parent=27 // pred_check
        %p330 = pneg %p94
      $region30: #{shufflemixer_layernorm.1} parent=27 // pred_check_branch
        %332 = sbr.rel (%p330) target = $region32
      $region31: #{shufflemixer_layernorm.1} parent=27 // pred_region
        %s333 = smul.u32 2, %s18
      $region32: #{shufflemixer_layernorm.1} parent=27 // pred_fallthru
        _
    $region28: #{shufflemixer_layernorm.1} parent=5 // pred_fallthru
      _
    %p334 = scmp.le.s32.totalorder 2, %s8
    // Predicated region
    $region33: #{shufflemixer_layernorm.1} parent=5 // pred_check
      %p335 = pneg %p334
    $region34: #{shufflemixer_layernorm.1} parent=5 // pred_check_branch
      %337 = sbr.rel (%p335) target = $region36
    $region35: #{shufflemixer_layernorm.1} parent=5 // pred_region
      %s338 = ssub.s32 %s8, 2
      // Predicated region
      $region37: #{shufflemixer_layernorm.1} parent=35 // pred_check
        %p339 = pneg %p100
      $region38: #{shufflemixer_layernorm.1} parent=35 // pred_check_branch
        %341 = sbr.rel (%p339) target = $region40
      $region39: #{shufflemixer_layernorm.1} parent=35 // pred_region
        %s342 = smul.u32 2, %s20
        %p343 = scmp.lt.s32.totalorder %s19, 1
        %s344 = scalar_select %p343, %s19, 1
        %p345 = scmp.lt.s32.totalorder %s342, 1
        %s346 = scalar_select %p345, %s342, 1
        %s347 = smul.addr %s344, 8
        %s348 = sadd.s32 %s346, %s347
        %s349 = smul.addr %s348, 8
        %s350 = scalar_lea.vmem %s2, %s349
      $region40: #{shufflemixer_layernorm.1} parent=35 // pred_fallthru
        _
    $region36: #{shufflemixer_layernorm.1} parent=5 // pred_fallthru
      _
  $region6: #{shufflemixer_layernorm.1} parent=0 // loop_footer
    %s12 = sadd.s32 1, %s8
  $region7: #{shufflemixer_layernorm.1} parent=0 // loop_footer_branch
    %7 = sbr.rel target = $region3
  $region8: #{shufflemixer_layernorm.1} parent=0 // loop_exit
    _

</llo_original>
